<compile_context>
chip_gen: v6e
topology: v6e:2x2x1
jax: 0.10.0
libtpu: 0.0.40
codegen_flags: <defaults>
</compile_context>

<pallas_src>
import functools

import jax
import jax.numpy as jnp
from jax.experimental import pallas as pl
from jax.experimental.pallas import tpu as pltpu


def sinusoidal_positional_encoding(seq_len: int, dim: int) -> jnp.ndarray:
    """Standard transformer sinusoidal PE: (seq_len, dim), float32."""
    pos = jnp.arange(seq_len, dtype=jnp.float32)[:, None]           # (S, 1)
    i = jnp.arange(dim, dtype=jnp.float32)[None, :]                  # (1, D)
    angle_rates = 1.0 / jnp.power(10000.0, (2.0 * jnp.floor(i / 2.0)) / dim)
    angles = pos * angle_rates                                       # (S, D)
    pe = jnp.where((jnp.arange(dim) % 2) == 0, jnp.sin(angles), jnp.cos(angles))
    return pe.astype(jnp.float32)


def _round_up(x: int, m: int) -> int:
    return (x + m - 1) // m * m


def _pick_tile_rows(seq_rows: int, k_pad: int, e_pad: int,
                    budget_bytes: int = 10 << 20) -> int:
    """Largest seq-row tile (multiple of 16, <=512) that fits a conservative
    VMEM budget (safe under v5e's 16 MiB scoped default and v7x's 64 MiB)."""
    cap = max(16, _round_up(seq_rows, 16))
    tm = 16
    for cand in (512, 256, 128, 64, 32, 16):
        need = (2 * cand * k_pad * 2          # x tile, double-buffered bf16
                + 2 * cand * e_pad * 4        # additive tile, f32
                + 2 * cand * e_pad * 4        # output tile (counted at f32)
                + 2 * k_pad * e_pad * 2)      # resident weight (bf16, 2 bufs)
        if need <= budget_bytes:
            tm = cand
            break
    return min(tm, cap)


def _patch_project_kernel(x_ref, w_ref, add_ref, out_ref):
    # x_ref:   (TM, K_pad)    bf16  -- row tile of [zero-cls-row; patches]
    # w_ref:   (K_pad, E_pad) bf16  -- flattened conv weight, resident
    # add_ref: (TM, E_pad)    f32   -- cls / (pos_embed + bias) additive rows
    # out_ref: (TM, E_pad)    out dtype (bf16 by default)
    acc = jnp.dot(x_ref[...], w_ref[...], preferred_element_type=jnp.float32)
    out_ref[...] = (acc + add_ref[...]).astype(out_ref.dtype)


@functools.partial(jax.jit, static_argnames=("patch_size", "out_dtype"))
def vit_patch_encoder_forward(images, conv_w, conv_b, cls_token, pos_embed, *,
                              patch_size: int, out_dtype=jnp.bfloat16):
    """images: (B, C, H, W) NCHW.  Returns (B, S+1, E) in `out_dtype`."""
    B, C, H, W = images.shape
    P = patch_size
    Hf, Wf = H // P, W // P
    S = Hf * Wf
    E = conv_w.shape[0]
    K = C * P * P

    # --- glue: cast to bf16 BEFORE the layout copy (half the bytes moved) ---
    x = images.astype(jnp.bfloat16)
    # (B, C, Hf, P, Wf, P) -> (B, Hf, Wf, C, P, P) -> (B, S, C*P*P)
    x = x.reshape(B, C, Hf, P, Wf, P).transpose(0, 2, 4, 1, 3, 5).reshape(B, S, K)

    # Lane/sublane-friendly padded dims.
    K_pad = _round_up(max(K, 128), 128)
    E_pad = _round_up(max(E, 128), 128)
    TM = _pick_tile_rows(S + 1, K_pad, E_pad)
    S1_pad = _round_up(S + 1, TM)

    # Single pad op: row 0 becomes the zero cls patch row (so the matmul
    # contributes 0 there), plus seq / K alignment padding.
    x = jnp.pad(x, ((0, 0), (1, S1_pad - (S + 1)), (0, K_pad - K)))

    # Additive table (f32, (S1_pad, E_pad)): row 0 = cls token,
    # rows 1..S = pos_embed + conv bias, remaining rows / columns zero.
    add = jnp.zeros((S1_pad, E_pad), jnp.float32)
    add = add.at[0, :E].set(cls_token.reshape(E).astype(jnp.float32))
    add = add.at[1:S + 1, :E].set(
        pos_embed.astype(jnp.float32) + conv_b[None, :].astype(jnp.float32))

    # Conv weight (E, C, P, P) -> (K_pad, E_pad), bf16, matching (c,ph,pw) flatten.
    w = conv_w.reshape(E, K).T.astype(jnp.bfloat16)
    w = jnp.pad(w, ((0, K_pad - K), (0, E_pad - E)))

    num_t = S1_pad // TM

    # VMEM headroom (harmless when generous; capped at v7x physical 64 MiB).
    need = (2 * TM * K_pad * 2 + 2 * TM * E_pad * 4 + 2 * TM * E_pad * 4
            + 2 * K_pad * E_pad * 2)
    vmem_limit = int(min(max(2 * need, 32 << 20), 64 << 20))

    out = pl.pallas_call(
        _patch_project_kernel,
        out_shape=jax.ShapeDtypeStruct((B, S1_pad, E_pad), out_dtype),
        grid_spec=pltpu.PrefetchScalarGridSpec(
            num_scalar_prefetch=0,
            grid=(num_t, B),                      # batch is the fast axis ->
            in_specs=[                            # additive re-used across B
                pl.BlockSpec((None, TM, K_pad), lambda t, b: (b, t, 0)),
                pl.BlockSpec((K_pad, E_pad), lambda t, b: (0, 0)),      # resident
                pl.BlockSpec((TM, E_pad), lambda t, b: (t, 0)),         # b-invariant
            ],
            out_specs=pl.BlockSpec((None, TM, E_pad), lambda t, b: (b, t, 0)),
        ),
        compiler_params=pltpu.CompilerParams(
            dimension_semantics=("parallel", "parallel"),
            vmem_limit_bytes=vmem_limit),
    )(x, w, add)

    # Strip seq / embed padding.
    return out[:, :S + 1, :E]


if __name__ == "__main__":
    # Small config consistent with the module: image 16x16, 4 channels,
    # patch/stride 4 -> 4x4 = 16 patches, embed dim 32.
    B, C, H, W = 2, 4, 16, 16
    patch_size = 4
    embedded_size = 32
    Hf, Wf = H // patch_size, W // patch_size
    seq_len = Hf * Wf

    key = jax.random.PRNGKey(0)
    k_img, k_w, k_b, k_cls = jax.random.split(key, 4)

    images = jax.random.normal(k_img, (B, C, H, W), dtype=jnp.float32)
    # Conv2d(num_channels, embedded_size, kernel=patch, stride=patch) params.
    conv_w = jax.random.normal(
        k_w, (embedded_size, C, patch_size, patch_size), dtype=jnp.float32) * 0.02
    conv_b = jax.random.normal(k_b, (embedded_size,), dtype=jnp.float32) * 0.02
    cls_token = jax.random.normal(k_cls, (1, 1, embedded_size), dtype=jnp.float32)
    pos_embed = sinusoidal_positional_encoding(seq_len, embedded_size)

    # TODO(synk): interpolation=True branch (F.interpolate bilinear) not
    # implemented; default config has interpolation=False.

    out = vit_patch_encoder_forward(
        images, conv_w, conv_b, cls_token, pos_embed, patch_size=patch_size)
    out = jax.block_until_ready(out)

    # Pure-f32 JAX reference of the same math.
    patches_ref = images.reshape(B, C, Hf, patch_size, Wf, patch_size)
    patches_ref = patches_ref.transpose(0, 2, 4, 1, 3, 5).reshape(B, seq_len, -1)
    proj_ref = patches_ref @ conv_w.reshape(embedded_size, -1).T + conv_b
    proj_ref = proj_ref + pos_embed[None]
    ref = jnp.concatenate(
        [jnp.broadcast_to(cls_token, (B, 1, embedded_size)), proj_ref], axis=1)

    assert out.shape == (B, seq_len + 1, embedded_size)
    out_f32 = out.astype(jnp.float32)
    # bf16 inputs + bf16 output stores (f32 accumulation) vs f32 reference.
    assert jnp.allclose(out_f32, ref, atol=3e-2, rtol=3e-2)
    # cls row: zero patch row + f32 additive, only bf16 output rounding left.
    assert jnp.allclose(
        out_f32[:, 0, :],
        jnp.broadcast_to(cls_token[0], (B, embedded_size)),
        atol=1e-2, rtol=1e-2)

    print("KERNEL_OK")
</pallas_src>

<mosaic_0001>
module attributes {stable_mosaic.version = 11 : i64} {
  func.func @_patch_project_kernel(%arg0: i32, %arg1: i32, %arg2: memref<1x32x128xbf16, #tpu.memory_space<vmem>>, %arg3: memref<128x128xbf16, #tpu.memory_space<vmem>>, %arg4: memref<32x128xf32, #tpu.memory_space<vmem>>, %arg5: memref<1x32x128xbf16, #tpu.memory_space<vmem>>) attributes {dimension_semantics = [#tpu.dimension_semantics<parallel>, #tpu.dimension_semantics<parallel>], iteration_bounds = array<i64: 1, 2>, scalar_prefetch = 0 : i64, scratch_operands = 0 : i64, tpu.core_type = #tpu.core_type<tc>, window_params = [{transform_indices = @transform_0, window_bounds = array<i64: 1, 32, 128>}, {pipeline_mode = #tpu.pipeline_mode<synchronous>, transform_indices = @transform_1, window_bounds = array<i64: 128, 128>}, {transform_indices = @transform_2, window_bounds = array<i64: 32, 128>}, {transform_indices = @transform_3, window_bounds = array<i64: 1, 32, 128>}]} {
    %c0 = arith.constant 0 : index
    %c0_0 = arith.constant 0 : index
    %c0_1 = arith.constant 0 : index
    %0 = vector.load %arg2[%c0, %c0_0, %c0_1] : memref<1x32x128xbf16, #tpu.memory_space<vmem>>, vector<1x32x128xbf16>
    %1 = vector.shape_cast %0 : vector<1x32x128xbf16> to vector<32x128xbf16>
    %c0_2 = arith.constant 0 : index
    %c0_3 = arith.constant 0 : index
    %2 = vector.load %arg3[%c0_2, %c0_3] : memref<128x128xbf16, #tpu.memory_space<vmem>>, vector<128x128xbf16>
    %cst = arith.constant dense<0.000000e+00> : vector<32x128xf32>
    %3 = tpu.matmul %1, %2, %cst {dimension_numbers = #tpu.dot_dimension_numbers<[1], [0], [0], [1], [0, 0, 1, 1], [], []>} : vector<32x128xbf16>, vector<128x128xbf16>, vector<32x128xf32> -> vector<32x128xf32>
    %c0_4 = arith.constant 0 : index
    %c0_5 = arith.constant 0 : index
    %4 = vector.load %arg4[%c0_4, %c0_5] : memref<32x128xf32, #tpu.memory_space<vmem>>, vector<32x128xf32>
    %5 = arith.addf %3, %4 : vector<32x128xf32>
    %6 = arith.truncf %5 : vector<32x128xf32> to vector<32x128xbf16>
    %c0_6 = arith.constant 0 : index
    %c0_7 = arith.constant 0 : index
    %c0_8 = arith.constant 0 : index
    %7 = vector.load %arg5[%c0_6, %c0_7, %c0_8] : memref<1x32x128xbf16, #tpu.memory_space<vmem>>, vector<1x32x128xbf16>
    %8 = vector.shape_cast %7 : vector<1x32x128xbf16> to vector<32x128xbf16>
    %9 = vector.shape_cast %6 : vector<32x128xbf16> to vector<1x32x128xbf16>
    tpu.vector_store %arg5[%c0_6, %c0_7, %c0_8], %9 {strides = array<i32>} : memref<1x32x128xbf16, #tpu.memory_space<vmem>>, vector<1x32x128xbf16>,
    return
  }
  func.func @transform_0(%arg0: i32, %arg1: i32) -> (i32, i32, i32) {
    %c0_i32 = arith.constant 0 : i32
    %c0_i32_0 = arith.constant 0 : i32
    return %arg1, %arg0, %c0_i32 : i32, i32, i32
  }
  func.func @transform_1(%arg0: i32, %arg1: i32) -> (i32, i32) {
    %c0_i32 = arith.constant 0 : i32
    %c0_i32_0 = arith.constant 0 : i32
    %c0_i32_1 = arith.constant 0 : i32
    return %c0_i32, %c0_i32_0 : i32, i32
  }
  func.func @transform_2(%arg0: i32, %arg1: i32) -> (i32, i32) {
    %c0_i32 = arith.constant 0 : i32
    %c0_i32_0 = arith.constant 0 : i32
    return %arg0, %c0_i32 : i32, i32
  }
  func.func @transform_3(%arg0: i32, %arg1: i32) -> (i32, i32, i32) {
    %c0_i32 = arith.constant 0 : i32
    %c0_i32_0 = arith.constant 0 : i32
    return %arg1, %arg0, %c0_i32 : i32, i32, i32
  }
}

</mosaic_0001>

<llo_original>
// kernel: vit_patch_encoder_forward.1
$region0: #{vit_patch_encoder_forward.1}
  #allocation0 [shape = 'u32[]', space=smem, size = 0x4, offset = 0x4, fixed_abs, tag = 'smem constant byte address 0x4 - core index']
  #allocation1 [shape = 'u32[144,128]{1,0:T(1,128)}', space=vmem, size = 0x12000, scoped, tag = 'internal scratch']
  %s0 = inlined_call_operand.vmem [shape: bf16[2,32,128], index: 0, kind: input, shape index: {}]
  %s1 = inlined_call_operand.vmem [shape: bf16[128,128], index: 1, kind: input, shape index: {}]
  %s2 = inlined_call_operand.vmem [shape: f32[32,128], index: 2, kind: input, shape index: {}]
  %s3 = inlined_call_operand.vmem [shape: bf16[2,32,128], index: 3, kind: output, shape index: {}]
  %s4 = sld [smem:[#allocation0]]
  $region45: #{vit_patch_encoder_forward.1} parent=0
    _
  %s6 = ssub.s32 1, %s4
  %s7 = scalar_select 0, %s6, %s4
  loop: start=0, step=1, limit=4
  $region2: #{vit_patch_encoder_forward.1} parent=0 // loop_pre_header
    _
  $region3: #{vit_patch_encoder_forward.1} parent=0 // loop_header
    %s9 = sphi 0, %s13
    %p10 = scmp.ge.s32.totalorder %s9, 4
    %s16 = sphi 0, %s28
    %s17 = sphi 0, %s24
    %s18 = sphi 0, %s16
    %s19 = sphi 0, %s17
    %s20 = sphi 0, %s18
    %s21 = sphi 0, %s19
    %s33 = sphi 0, %s35
    %s36 = sphi 0, %s33
    %s37 = sphi 0, %s36
    %s53 = sphi 0, %s37
    %s57 = sphi 0, %s57
    %s59 = sphi 0, %s57
    %s60 = sphi 0, %s59
    %s74 = sphi 0, %s60
    %s80 = sphi 0, %s82
    %s83 = sphi 0, %s80
    %s84 = sphi 0, %s83
    %s100 = sphi 0, %s84
    %s108 = sphi 0, %s110
    %s111 = sphi 0, %s108
    %s112 = sphi 0, %s111
    %s128 = sphi 0, %s112
  $region4: #{vit_patch_encoder_forward.1} parent=0 // loop_header_branch
    %12 = sbr.rel (%p10) target = $region8
  $region5: #{vit_patch_encoder_forward.1} parent=0 // loop_body
    %s14 = ssub.s32 %s9, 1
    %s15 = ssub.s32 %s9, 2
    %s22 = sadd.s32 1, %s17
    %p23 = scmp.ge.s32.totalorder %s22, 2
    %s24 = scalar_select %p23, 0, %s22
    %s25 = sadd.s32 1, %s16
    %s26 = scalar_select %p23, %s25, %s16
    %p27 = scmp.ge.s32.totalorder %s26, 1
    %s28 = scalar_select %p27, 0, %s26
    %s29 = ssub.s32 %s17, %s24
    %s30 = ssub.s32 %s16, %s28
    %s31 = sor.u32 %s29, %s30
    %p32 = scmp.eq.s32.totalorder %s31, 0
    %s34 = sadd.s32 %s33, 1
    %s35 = scalar_select %p32, %s33, %s34
    %p38 = pneg %p32
    %p39 = scmp.eq.s32.totalorder %s9, 1
    %p40 = por %p38, %p39
    %p41 = scmp.ne.s32.totalorder %s33, %s36
    %p42 = scmp.eq.s32.totalorder %s9, 0
    %p43 = por %p41, %p42
    %p44 = scmp.ne.s32.totalorder %s33, %s36
    %p45 = scmp.eq.s32.totalorder %s14, 1
    %p46 = por %p44, %p45
    %p47 = scmp.ne.s32.totalorder %s36, %s37
    %p48 = scmp.eq.s32.totalorder %s14, 0
    %p49 = por %p47, %p48
    %p50 = scmp.ne.s32.totalorder %s36, %s37
    %p51 = scmp.eq.s32.totalorder %s15, 1
    %p52 = por %p50, %p51
    %p54 = scmp.ne.s32.totalorder %s37, %s53
    %p55 = scmp.eq.s32.totalorder %s15, 0
    %p56 = por %p54, %p55
    %s58 = sadd.s32 %s57, 1
    %p61 = scmp.eq.s32.totalorder %s9, 1
    %p62 = scmp.ne.s32.totalorder %s57, %s59
    %p63 = scmp.eq.s32.totalorder %s9, 0
    %p64 = por %p62, %p63
    %p65 = scmp.ne.s32.totalorder %s57, %s59
    %p66 = scmp.eq.s32.totalorder %s14, 1
    %p67 = por %p65, %p66
    %p68 = scmp.ne.s32.totalorder %s59, %s60
    %p69 = scmp.eq.s32.totalorder %s14, 0
    %p70 = por %p68, %p69
    %p71 = scmp.ne.s32.totalorder %s59, %s60
    %p72 = scmp.eq.s32.totalorder %s15, 1
    %p73 = por %p71, %p72
    %p75 = scmp.ne.s32.totalorder %s60, %s74
    %p76 = scmp.eq.s32.totalorder %s15, 0
    %p77 = por %p75, %p76
    %s78 = ssub.s32 %s16, %s28
    %p79 = scmp.eq.s32.totalorder %s78, 0
    %s81 = sadd.s32 %s80, 1
    %s82 = scalar_select %p79, %s80, %s81
    %p85 = pneg %p79
    %p86 = scmp.eq.s32.totalorder %s9, 1
    %p87 = por %p85, %p86
    %p88 = scmp.ne.s32.totalorder %s80, %s83
    %p89 = scmp.eq.s32.totalorder %s9, 0
    %p90 = por %p88, %p89
    %p91 = scmp.ne.s32.totalorder %s80, %s83
    %p92 = scmp.eq.s32.totalorder %s14, 1
    %p93 = por %p91, %p92
    %p94 = scmp.ne.s32.totalorder %s83, %s84
    %p95 = scmp.eq.s32.totalorder %s14, 0
    %p96 = por %p94, %p95
    %p97 = scmp.ne.s32.totalorder %s83, %s84
    %p98 = scmp.eq.s32.totalorder %s15, 1
    %p99 = por %p97, %p98
    %p101 = scmp.ne.s32.totalorder %s84, %s100
    %p102 = scmp.eq.s32.totalorder %s15, 0
    %p103 = por %p101, %p102
    %s104 = ssub.s32 %s17, %s24
    %s105 = ssub.s32 %s16, %s28
    %s106 = sor.u32 %s104, %s105
    %p107 = scmp.eq.s32.totalorder %s106, 0
    %s109 = sadd.s32 %s108, 1
    %s110 = scalar_select %p107, %s108, %s109
    %p113 = pneg %p107
    %p114 = scmp.eq.s32.totalorder %s9, 1
    %p115 = por %p113, %p114
    %p116 = scmp.ne.s32.totalorder %s108, %s111
    %p117 = scmp.eq.s32.totalorder %s9, 0
    %p118 = por %p116, %p117
    %p119 = scmp.ne.s32.totalorder %s108, %s111
    %p120 = scmp.eq.s32.totalorder %s14, 1
    %p121 = por %p119, %p120
    %p122 = scmp.ne.s32.totalorder %s111, %s112
    %p123 = scmp.eq.s32.totalorder %s14, 0
    %p124 = por %p122, %p123
    %p125 = scmp.ne.s32.totalorder %s111, %s112
    %p126 = scmp.eq.s32.totalorder %s15, 1
    %p127 = por %p125, %p126
    %p129 = scmp.ne.s32.totalorder %s112, %s128
    %p130 = scmp.eq.s32.totalorder %s15, 0
    %p131 = por %p129, %p130
    %p132 = scmp.le.s32.totalorder 1, %s9
    %p133 = scmp.lt.s32.totalorder %s9, 3
    %p134 = pnand %p132, %p133
    %p135 = pneg %p134
    // Predicated region
    $region9: #{vit_patch_encoder_forward.1} parent=5 // pred_check
      _
    $region10: #{vit_patch_encoder_forward.1} parent=5 // pred_check_branch
      %137 = sbr.rel (%p134) target = $region12
    $region11: #{vit_patch_encoder_forward.1} parent=5 // pred_region
      %s138 = ssub.s32 %s9, 1
      // Predicated region
      $region13: #{vit_patch_encoder_forward.1} parent=11 // pred_check
        %p139 = pneg %p70
      $region14: #{vit_patch_encoder_forward.1} parent=11 // pred_check_branch
        %141 = sbr.rel (%p139) target = $region16
      $region15: #{vit_patch_encoder_forward.1} parent=11 // pred_region
        _
      $region16: #{vit_patch_encoder_forward.1} parent=11 // pred_fallthru
        _
      // Predicated region
      $region17: #{vit_patch_encoder_forward.1} parent=11 // pred_check
        %p142 = pneg %p96
      $region18: #{vit_patch_encoder_forward.1} parent=11 // pred_check_branch
        %144 = sbr.rel (%p142) target = $region20
      $region19: #{vit_patch_encoder_forward.1} parent=11 // pred_region
        %s145 = smul.u32 4, %s18
        %p146 = scmp.lt.s32.totalorder %s145, 3
        %s147 = scalar_select %p146, %s145, 3
        %s148 = smul.addr %s147, 8
        %s149 = scalar_lea.vmem %s2, %s148
        %s150 = smul.u32 4, %s18
      $region20: #{vit_patch_encoder_forward.1} parent=11 // pred_fallthru
        _
    $region12: #{vit_patch_encoder_forward.1} parent=5 // pred_fallthru
      _
    %p151 = scmp.lt.s32.totalorder %s9, 2
    // Predicated region
    $region21: #{vit_patch_encoder_forward.1} parent=5 // pred_check
      %p152 = pneg %p151
    $region22: #{vit_patch_encoder_forward.1} parent=5 // pred_check_branch
      %154 = sbr.rel (%p152) target = $region24
    $region23: #{vit_patch_encoder_forward.1} parent=5 // pred_region
      // Predicated region
      $region25: #{vit_patch_encoder_forward.1} parent=23 // pred_check
        %p155 = pneg %p43
      $region26: #{vit_patch_encoder_forward.1} parent=23 // pred_check_branch
        %157 = sbr.rel (%p155) target = $region28
      $region27: #{vit_patch_encoder_forward.1} parent=23 // pred_region
        %s158 = smul.u32 4, %s16
        %p159 = scmp.lt.s32.totalorder %s17, 1
        %s160 = scalar_select %p159, %s17, 1
        %p161 = scmp.lt.s32.totalorder %s158, 3
        %s162 = scalar_select %p161, %s158, 3
        %s163 = smul.addr %s160, 4
        %s164 = sadd.s32 %s162, %s163
        %s165 = smul.addr %s164, 4
        %s166 = scalar_lea.vmem %s0, %s165
        %s167 = smul.u32 4, %s16
      $region28: #{vit_patch_encoder_forward.1} parent=23 // pred_fallthru
        _
    $region24: #{vit_patch_encoder_forward.1} parent=5 // pred_fallthru
      _
    %p168 = scmp.le.s32.totalorder 1, %s9
    %p169 = scmp.lt.s32.totalorder %s9, 3
    %p170 = pnand %p168, %p169
    %p171 = pneg %p170
    // Predicated region
    $region29: #{vit_patch_encoder_forward.1} parent=5 // pred_check
      _
    $region30: #{vit_patch_encoder_forward.1} parent=5 // pred_check_branch
      %173 = sbr.rel (%p170) target = $region32
    $region31: #{vit_patch_encoder_forward.1} parent=5 // pred_region
      %s174 = ssub.s32 %s9, 1
      %s175 = smul.u32 4, %s18
      %p176 = scmp.lt.s32.totalorder %s19, 1
      %s177 = scalar_select %p176, %s19, 1
      %p178 = scmp.lt.s32.totalorder %s175, 3
      %s179 = scalar_select %p178, %s175, 3
      %s180 = smul.addr %s177, 4
      %s181 = sadd.s32 %s179, %s180
      %s182 = smul.addr %s181, 4
      %s183 = scalar_lea.vmem %s0, %s182
      %p184 = pneg %p49
      %p185 = pneg %p46
      %p186 = pneg %p70
      %p187 = pneg %p67
      %s188 = smul.u32 4, %s18
      %p189 = scmp.lt.s32.totalorder %s188, 3
      %s190 = scalar_select %p189, %s188, 3
      %s191 = smul.addr %s190, 8
      %s192 = scalar_lea.vmem %s2, %s191
      %p193 = pneg %p96
      %p194 = pneg %p93
      %p195 = pneg %p124
      %p196 = pneg %p121
      %s197 = smul.u32 4, %s18
      %p198 = scmp.lt.s32.totalorder %s19, 1
      %s199 = scalar_select %p198, %s19, 1
      %p200 = scmp.lt.s32.totalorder %s197, 3
      %s201 = scalar_select %p200, %s197, 3
      %s202 = smul.addr %s199, 4
      %s203 = sadd.s32 %s201, %s202
      %s204 = smul.addr %s203, 4
      %s205 = scalar_lea.vmem %s3, %s204
      %s206 = smul.u32 4, %s18
      %p207 = scmp.lt.s32.totalorder %s19, 1
      %s208 = scalar_select %p207, %s19, 1
      %p209 = scmp.lt.s32.totalorder %s206, 3
      %s210 = scalar_select %p209, %s206, 3
      %s211 = smul.addr %s208, 4
      %s212 = sadd.s32 %s210, %s211
      %s213 = smul.addr %s212, 4
      %s214 = scalar_lea.vmem %s0, %s213
      %s215 = smul.u32 4, %s18
      %s216 = smul.u32 4, %s18
      %p217 = scmp.lt.s32.totalorder %s216, 3
      %s218 = scalar_select %p217, %s216, 3
      %s219 = smul.addr %s218, 8
      %s220 = scalar_lea.vmem %s2, %s219
      %s221 = smul.u32 4, %s18
      %s222 = smul.u32 4, %s18
      %p223 = scmp.lt.s32.totalorder %s19, 1
      %s224 = scalar_select %p223, %s19, 1
      %p225 = scmp.lt.s32.totalorder %s222, 3
      %s226 = scalar_select %p225, %s222, 3
      %s227 = smul.addr %s224, 4
      %s228 = sadd.s32 %s226, %s227
      %s229 = smul.addr %s228, 4
      %s230 = scalar_lea.vmem %s3, %s229
      %s231 = smul.u32 4, %s18
      %v233 = vld [vmem:[%s214] sm:$0xf]
      %v234 = vld [vmem:[%s214 + $0x4] sm:$0xf]
      %v235 = vld [vmem:[%s214 + $0x8] sm:$0xf]
      %v236 = vld [vmem:[%s214 + $0xc] sm:$0xf]
      %v237 = vld [vmem:[%s1] sm:$0xf]
      %v238 = vld [vmem:[%s1 + $0x4] sm:$0xf]
      %v239 = vld [vmem:[%s1 + $0x8] sm:$0xf]
      %v240 = vld [vmem:[%s1 + $0xc] sm:$0xf]
      %v241 = vld [vmem:[%s1 + $0x10] sm:$0xf]
      %v242 = vld [vmem:[%s1 + $0x14] sm:$0xf]
      %v243 = vld [vmem:[%s1 + $0x18] sm:$0xf]
      %v244 = vld [vmem:[%s1 + $0x1c] sm:$0xf]
      %v245 = vld [vmem:[%s1 + $0x20] sm:$0xf]
      %v246 = vld [vmem:[%s1 + $0x24] sm:$0xf]
      %v247 = vld [vmem:[%s1 + $0x28] sm:$0xf]
      %v248 = vld [vmem:[%s1 + $0x2c] sm:$0xf]
      %v249 = vld [vmem:[%s1 + $0x30] sm:$0xf]
      %v250 = vld [vmem:[%s1 + $0x34] sm:$0xf]
      %v251 = vld [vmem:[%s1 + $0x38] sm:$0xf]
      %v252 = vld [vmem:[%s1 + $0x3c] sm:$0xf]
      %v253 = vld [vmem:[%s220] sm:$0xff]
      %v254 = vld [vmem:[%s220 + $0x8] sm:$0xff]
      %v255 = vld [vmem:[%s220 + $0x10] sm:$0xff]
      %v256 = vld [vmem:[%s220 + $0x18] sm:$0xff]
      %v261 = vunpack.c.l.b16 %v233
      %v262 = vunpack.c.l.b16 %v234
      %v263 = vunpack.c.l.b16 %v235
      %v264 = vunpack.c.l.b16 %v236
      %v265 = vpack.c.b16 %v262, %v261
      %v266 = vpack.c.b16 %v264, %v263
      %v285 = vunpack.c.l.b16 %v237
      %v286 = vunpack.c.l.b16 %v238
      %v287 = vunpack.c.l.b16 %v239
      %v288 = vunpack.c.l.b16 %v240
      %v289 = vunpack.c.l.b16 %v241
      %v290 = vunpack.c.l.b16 %v242
      %v291 = vunpack.c.l.b16 %v243
      %v292 = vunpack.c.l.b16 %v244
      %v293 = vunpack.c.l.b16 %v245
      %v294 = vunpack.c.l.b16 %v246
      %v295 = vunpack.c.l.b16 %v247
      %v296 = vunpack.c.l.b16 %v248
      %v297 = vunpack.c.l.b16 %v249
      %v298 = vunpack.c.l.b16 %v250
      %v299 = vunpack.c.l.b16 %v251
      %v300 = vunpack.c.l.b16 %v252
      %v301 = vpack.c.b16 %v286, %v285
      %v302 = vpack.c.b16 %v288, %v287
      %v303 = vpack.c.b16 %v290, %v289
      %v304 = vpack.c.b16 %v292, %v291
      %v305 = vpack.c.b16 %v294, %v293
      %v306 = vpack.c.b16 %v296, %v295
      %v307 = vpack.c.b16 %v298, %v297
      %v308 = vpack.c.b16 %v300, %v299
      %317 = vmatprep.subr.bf16.mxu0 0
      %318 = vmatpush1.bf16.msra.mxu0 %v308
      %319 = vmatprep.subr.bf16.mxu0 0
      %320 = vmatpush1.bf16.msra.mxu0 %v307
      %321 = vmatprep.subr.bf16.mxu0 0
      %322 = vmatpush1.bf16.msra.mxu0 %v306
      %323 = vmatprep.subr.bf16.mxu0 0
      %324 = vmatpush1.bf16.msra.mxu0 %v305
      %325 = vmatprep.subr.bf16.mxu0 0
      %326 = vmatpush1.bf16.msra.mxu0 %v304
      %327 = vmatprep.subr.bf16.mxu0 0
      %328 = vmatpush1.bf16.msra.mxu0 %v303
      %329 = vmatprep.subr.bf16.mxu0 0
      %330 = vmatpush1.bf16.msra.mxu0 %v302
      %331 = vmatprep.subr.bf16.mxu0 0
      %332 = vmatpush1.bf16.msra.mxu0 %v301
      %333 = vmatprep.subr.bf16.mxu0 0
      %334 = vmatpush2.bf16.msra.mxu0 0
      %335 = vmatprep.subr.bf16.mxu0 0
      %336 = vmatpush2.bf16.msra.mxu0 0
      %337 = vmatprep.subr.bf16.mxu0 0
      %338 = vmatpush2.bf16.msra.mxu0 0
      %339 = vmatprep.subr.bf16.mxu0 0
      %340 = vmatpush2.bf16.msra.mxu0 0
      %341 = vmatprep.subr.bf16.mxu0 0
      %342 = vmatpush2.bf16.msra.mxu0 0
      %343 = vmatprep.subr.bf16.mxu0 0
      %344 = vmatpush2.bf16.msra.mxu0 0
      %345 = vmatprep.subr.bf16.mxu0 0
      %346 = vmatpush2.bf16.msra.mxu0 0
      %347 = vmatprep.subr.bf16.mxu0 0
      %348 = vmatpush2.bf16.msra.mxu0 0
      %349 = vmatprep.mubr.bf16.mxu0 0
      %350 = vmatmul.mubr.bf16.gmra.mxu0 %v265
      %v351 = vpop.f32.mrf.mxu0
      %v352 = vadd.f32 %v253, %v351
      %v353 = vpop.f32.mrf.mxu0
      %v354 = vpop.f32.mrf.mxu0
      %v355 = vadd.f32 %v254, %v354
      %v356 = vpop.f32.mrf.mxu0
      %357 = vmatprep.mubr.bf16.mxu0 0
      %358 = vmatmul.mubr.bf16.gmra.mxu0 %v266
      %v359 = vpop.f32.mrf.mxu0
      %v360 = vadd.f32 %v255, %v359
      %v361 = vpop.f32.mrf.mxu0
      %v362 = vpop.f32.mrf.mxu0
      %v363 = vadd.f32 %v256, %v362
      %v364 = vpop.f32.mrf.mxu0
      %365 = vdwg.mxu0
      %v366 = vpack.c.bf16 %v355, %v352
      %v367 = vpack.c.bf16 %v363, %v360
      %v370 = vunpack.c.l.b16 %v366
      %v371 = vunpack.c.h.b16 %v366
      %v372 = vunpack.c.l.b16 %v367
      %v373 = vunpack.c.h.b16 %v367
      %v374 = vpack.c.b16 %v370, %v370
      %v375 = vpack.c.b16 %v371, %v371
      %v376 = vpack.c.b16 %v372, %v372
      %v377 = vpack.c.b16 %v373, %v373
      %382 = vst [vmem:[%s230] sm:$0xf] %v374
      %383 = vst [vmem:[%s230 + $0x4] sm:$0xf] %v375
      %384 = vst [vmem:[%s230 + $0x8] sm:$0xf] %v376
      %385 = vst [vmem:[%s230 + $0xc] sm:$0xf] %v377
      %s386 = smul.u32 4, %s18
      %p387 = scmp.lt.s32.totalorder %s19, 1
      %s388 = scalar_select %p387, %s19, 1
      %p389 = scmp.lt.s32.totalorder %s386, 3
      %s390 = scalar_select %p389, %s386, 3
      %s391 = smul.addr %s388, 4
      %s392 = sadd.s32 %s390, %s391
      %s393 = smul.addr %s392, 4
      %s394 = scalar_lea.vmem %s3, %s393
      // Predicated region
      $region33: #{vit_patch_encoder_forward.1} parent=31 // pred_check
        %p395 = pneg %p121
      $region34: #{vit_patch_encoder_forward.1} parent=31 // pred_check_branch
        %397 = sbr.rel (%p395) target = $region36
      $region35: #{vit_patch_encoder_forward.1} parent=31 // pred_region
        %s398 = smul.u32 4, %s18
      $region36: #{vit_patch_encoder_forward.1} parent=31 // pred_fallthru
        _
    $region32: #{vit_patch_encoder_forward.1} parent=5 // pred_fallthru
      _
    %p399 = scmp.le.s32.totalorder 2, %s9
    // Predicated region
    $region37: #{vit_patch_encoder_forward.1} parent=5 // pred_check
      %p400 = pneg %p399
    $region38: #{vit_patch_encoder_forward.1} parent=5 // pred_check_branch
      %402 = sbr.rel (%p400) target = $region40
    $region39: #{vit_patch_encoder_forward.1} parent=5 // pred_region
      %s403 = ssub.s32 %s9, 2
      // Predicated region
      $region41: #{vit_patch_encoder_forward.1} parent=39 // pred_check
        %p404 = pneg %p127
      $region42: #{vit_patch_encoder_forward.1} parent=39 // pred_check_branch
        %406 = sbr.rel (%p404) target = $region44
      $region43: #{vit_patch_encoder_forward.1} parent=39 // pred_region
        %s407 = smul.u32 4, %s20
        %p408 = scmp.lt.s32.totalorder %s21, 1
        %s409 = scalar_select %p408, %s21, 1
        %p410 = scmp.lt.s32.totalorder %s407, 3
        %s411 = scalar_select %p410, %s407, 3
        %s412 = smul.addr %s409, 4
        %s413 = sadd.s32 %s411, %s412
        %s414 = smul.addr %s413, 4
        %s415 = scalar_lea.vmem %s3, %s414
      $region44: #{vit_patch_encoder_forward.1} parent=39 // pred_fallthru
        _
    $region40: #{vit_patch_encoder_forward.1} parent=5 // pred_fallthru
      _
  $region6: #{vit_patch_encoder_forward.1} parent=0 // loop_footer
    %s13 = sadd.s32 1, %s9
  $region7: #{vit_patch_encoder_forward.1} parent=0 // loop_footer_branch
    %8 = sbr.rel target = $region3
  $region8: #{vit_patch_encoder_forward.1} parent=0 // loop_exit
    _

</llo_original>
